<compile_context>
chip_gen: v7x
topology: tpu7x:2x2x1
jax: 0.10.0
libtpu: 0.0.40
codegen_flags: <defaults>
</compile_context>

<pallas_src>
import functools

import jax
import jax.numpy as jnp
from jax.experimental import pallas as pl
from jax.experimental.pallas import tpu as pltpu


def _entropy_kernel(x_ref, o_ref, acc_ref, *, lane_tile, total_lanes):
    """One (batch, lane-tile) grid step.

    x_ref:   (1, C, lane_tile) input block; softmax is over the C axis.
    o_ref:   (1, 8, 128) per-batch output block (partial sum, broadcast).
    acc_ref: (1, lane_tile) f32 VMEM accumulator of per-column entropy rows.
    """
    t = pl.program_id(1)

    @pl.when(t == 0)
    def _init():
        acc_ref[...] = jnp.zeros_like(acc_ref)

    x = x_ref[0].astype(jnp.float32)                 # (C, T)  (bf16 upcast on-chip)
    mx = jnp.max(x, axis=0, keepdims=True)           # (1, T)
    xm = x - mx                                      # (C, T)
    e = jnp.exp(xm)                                  # (C, T)  EUP
    s = jnp.sum(e, axis=0, keepdims=True)            # (1, T)
    num = jnp.sum(e * xm, axis=0, keepdims=True)     # (1, T)
    # per-column sum_c softmax*log_softmax == num / s - log(s)
    ent = num / s - jnp.log(s)                       # (1, T)

    if total_lanes % lane_tile != 0:
        # mask out padded lanes of the last (remainder) tile
        col = t * lane_tile + jax.lax.broadcasted_iota(jnp.int32, ent.shape, 1)
        ent = jnp.where(col < total_lanes, ent, 0.0)

    acc_ref[...] += ent

    @pl.when(t == pl.num_programs(1) - 1)
    def _finish():
        o_ref[...] = jnp.full(o_ref.shape, jnp.sum(acc_ref[...]), dtype=o_ref.dtype)


def entropy_loss(x_nchw, batch_size, *, max_lane_tile=2048):
    """Pallas equivalent of EntropyLoss().forward(x, batch_size)."""
    n, c, h, w = x_nchw.shape
    m = h * w

    # Free row-major reshape (no HBM transpose): channels -> sublanes,
    # fused spatial axis -> lanes.
    x3 = x_nchw.reshape(n, c, m)

    # Lane tile: big multiple of 128 (amortize ~0.35us/grid-step, unmasked
    # vld/vst), capped so one (C, tile) input buffer is <= ~4 MiB so the
    # double-buffered pipeline + temporaries fit the scoped-VMEM default on
    # v5e/v6e and v7x (which has half the VMEM).
    itemsize = jnp.dtype(x_nchw.dtype).itemsize
    cap = max(128, ((4 * 1024 * 1024) // max(1, c * itemsize)) // 128 * 128)
    if m >= 128:
        tile = min(max_lane_tile, cap, (m // 128) * 128)
    else:
        tile = m  # full-extent lane block for tiny spatial sizes
    num_t = -(-m // tile)

    kernel = functools.partial(_entropy_kernel, lane_tile=tile, total_lanes=m)

    partials = pl.pallas_call(
        kernel,
        out_shape=jax.ShapeDtypeStruct((n, 8, 128), jnp.float32),
        grid_spec=pltpu.PrefetchScalarGridSpec(
            num_scalar_prefetch=0,
            grid=(n, num_t),
            in_specs=[pl.BlockSpec((1, c, tile), lambda b, t: (b, 0, t))],
            out_specs=pl.BlockSpec((1, 8, 128), lambda b, t: (b, 0, 0)),
            scratch_shapes=[pltpu.VMEM((1, tile), jnp.float32)],
        ),
        compiler_params=pltpu.CompilerParams(
            dimension_semantics=("parallel", "arbitrary")),
    )(x3)

    # Tiny cross-batch reduction + (-1/batch_size) scaling outside the kernel.
    return -jnp.sum(partials[:, 0, 0]) / batch_size


def entropy_loss_ref(x, batch_size):
    b = jax.nn.softmax(x, axis=1) * jax.nn.log_softmax(x, axis=1)
    return -1.0 * jnp.sum(b) / batch_size


if __name__ == "__main__":
    key = jax.random.PRNGKey(0)
    x = jax.random.normal(key, (2, 4, 16, 16), dtype=jnp.float32)
    batch_size = 2

    out = entropy_loss(x, batch_size)
    out = jax.block_until_ready(out)

    ref = entropy_loss_ref(x, batch_size)
    assert jnp.allclose(out, ref, rtol=1e-5, atol=1e-5), (out, ref)

    print("KERNEL_OK")
</pallas_src>

<mosaic_0001>
module attributes {stable_mosaic.version = 11 : i64} {
  func.func @_entropy_kernel(%arg0: i32, %arg1: i32, %arg2: memref<1x4x256xf32, #tpu.memory_space<vmem>>, %arg3: memref<1x8x128xf32, #tpu.memory_space<vmem>>, %arg4: memref<1x256xf32, #tpu.memory_space<vmem>>) attributes {dimension_semantics = [#tpu.dimension_semantics<parallel>, #tpu.dimension_semantics<arbitrary>], iteration_bounds = array<i64: 2, 1>, scalar_prefetch = 0 : i64, scratch_operands = 1 : i64, tpu.core_type = #tpu.core_type<tc>, window_params = [{transform_indices = @transform_0, window_bounds = array<i64: 1, 4, 256>}, {transform_indices = @transform_1, window_bounds = array<i64: 1, 8, 128>}]} {
    %c0_i32 = arith.constant 0 : i32
    %0 = arith.cmpi eq, %arg1, %c0_i32 : i32
    %1 = arith.extui %0 : i1 to i32
    %c0_i32_0 = arith.constant 0 : i32
    %2 = arith.cmpi ne, %1, %c0_i32_0 : i32
    scf.if %2 {
      %cst_11 = arith.constant 0.000000e+00 : f32
      %24 = vector.broadcast %cst_11 : f32 to vector<1x256xf32>
      %c0_12 = arith.constant 0 : index
      %c0_13 = arith.constant 0 : index
      %25 = vector.load %arg4[%c0_12, %c0_13] : memref<1x256xf32, #tpu.memory_space<vmem>>, vector<1x256xf32>
      tpu.vector_store %arg4[%c0_12, %c0_13], %24 {strides = array<i32>} : memref<1x256xf32, #tpu.memory_space<vmem>>, vector<1x256xf32>,
    } else {
    }
    %c0 = arith.constant 0 : index
    %c0_1 = arith.constant 0 : index
    %c0_2 = arith.constant 0 : index
    %3 = vector.load %arg2[%c0, %c0_1, %c0_2] : memref<1x4x256xf32, #tpu.memory_space<vmem>>, vector<1x4x256xf32>
    %4 = vector.shape_cast %3 : vector<1x4x256xf32> to vector<4x256xf32>
    %cst = arith.constant dense<0xFF800000> : vector<256xf32>
    %5 = vector.multi_reduction <maximumf>, %4, %cst [0] : vector<4x256xf32> to vector<256xf32>
    %6 = vector.shape_cast %5 : vector<256xf32> to vector<1x256xf32>
    %7 = vector.broadcast %6 : vector<1x256xf32> to vector<4x256xf32>
    %8 = arith.subf %4, %7 : vector<4x256xf32>
    %9 = math.exp %8 : vector<4x256xf32>
    %cst_3 = arith.constant dense<0.000000e+00> : vector<256xf32>
    %10 = vector.multi_reduction <add>, %9, %cst_3 [0] : vector<4x256xf32> to vector<256xf32>
    %11 = vector.shape_cast %10 : vector<256xf32> to vector<1x256xf32>
    %12 = arith.mulf %9, %8 : vector<4x256xf32>
    %cst_4 = arith.constant dense<0.000000e+00> : vector<256xf32>
    %13 = vector.multi_reduction <add>, %12, %cst_4 [0] : vector<4x256xf32> to vector<256xf32>
    %14 = vector.shape_cast %13 : vector<256xf32> to vector<1x256xf32>
    %15 = arith.divf %14, %11 : vector<1x256xf32>
    %16 = math.log %11 : vector<1x256xf32>
    %17 = arith.subf %15, %16 : vector<1x256xf32>
    %c0_5 = arith.constant 0 : index
    %c0_6 = arith.constant 0 : index
    %18 = vector.load %arg4[%c0_5, %c0_6] : memref<1x256xf32, #tpu.memory_space<vmem>>, vector<1x256xf32>
    %19 = arith.addf %18, %17 : vector<1x256xf32>
    %c0_7 = arith.constant 0 : index
    %c0_8 = arith.constant 0 : index
    %20 = vector.load %arg4[%c0_7, %c0_8] : memref<1x256xf32, #tpu.memory_space<vmem>>, vector<1x256xf32>
    tpu.vector_store %arg4[%c0_7, %c0_8], %19 {strides = array<i32>} : memref<1x256xf32, #tpu.memory_space<vmem>>, vector<1x256xf32>,
    %c0_i32_9 = arith.constant 0 : i32
    %21 = arith.cmpi eq, %arg1, %c0_i32_9 : i32
    %22 = arith.extui %21 : i1 to i32
    %c0_i32_10 = arith.constant 0 : i32
    %23 = arith.cmpi ne, %22, %c0_i32_10 : i32
    scf.if %23 {
      %c0_11 = arith.constant 0 : index
      %c0_12 = arith.constant 0 : index
      %24 = vector.load %arg4[%c0_11, %c0_12] : memref<1x256xf32, #tpu.memory_space<vmem>>, vector<1x256xf32>
      %25 = vector.shape_cast %24 : vector<1x256xf32> to vector<1x1x256xf32>
      %cst_13 = arith.constant dense<0.000000e+00> : vector<1xf32>
      %26 = vector.multi_reduction <add>, %25, %cst_13 [1, 2] : vector<1x1x256xf32> to vector<1xf32>
      %27 = vector.shape_cast %26 : vector<1xf32> to vector<1x1x1xf32>
      %28 = vector.extract %27[0, 0, 0] : f32 from vector<1x1x1xf32>
      %29 = vector.broadcast %28 : f32 to vector<1x8x128xf32>
      %c0_14 = arith.constant 0 : index
      %c0_15 = arith.constant 0 : index
      %c0_16 = arith.constant 0 : index
      %30 = vector.load %arg3[%c0_14, %c0_15, %c0_16] : memref<1x8x128xf32, #tpu.memory_space<vmem>>, vector<1x8x128xf32>
      tpu.vector_store %arg3[%c0_14, %c0_15, %c0_16], %29 {strides = array<i32>} : memref<1x8x128xf32, #tpu.memory_space<vmem>>, vector<1x8x128xf32>,
    } else {
    }
    return
  }
  func.func @transform_0(%arg0: i32, %arg1: i32) -> (i32, i32, i32) {
    %c0_i32 = arith.constant 0 : i32
    %c0_i32_0 = arith.constant 0 : i32
    return %arg0, %c0_i32, %arg1 : i32, i32, i32
  }
  func.func @transform_1(%arg0: i32, %arg1: i32) -> (i32, i32, i32) {
    %c0_i32 = arith.constant 0 : i32
    %c0_i32_0 = arith.constant 0 : i32
    %c0_i32_1 = arith.constant 0 : i32
    return %arg0, %c0_i32, %c0_i32_0 : i32, i32, i32
  }
}

</mosaic_0001>

<llo_original>
// kernel: tpu_custom_call.1
$region0: #{tpu_custom_call.1}
  #allocation0 [shape = 'u32[]', space=smem, size = 0x4, offset = 0x4, fixed_abs, tag = 'smem constant byte address 0x4 - core index']
  #allocation1 [shape = 'u32[144,128]{1,0:T(1,128)}', space=vmem, size = 0x12000, scoped, tag = 'internal scratch']
  #allocation2 [shape = 'f32[1,256]{1,0:T(1,128)}', space=vmem, size = 0x400, scoped, tag = 'scratch operand']
  %s0 = inlined_call_operand.hbm [shape: f32[2,4,256], index: 0, kind: input, shape index: {}]
  %s1 = inlined_call_operand.hbm [shape: f32[2,8,128], index: 1, kind: output, shape index: {}]
  %s2 = sld [smem:[#allocation0]]
  $region49: #{tpu_custom_call.1} parent=0
    _
  %s4 = ssub.s32 1, %s2
  %s5 = scalar_select 0, %s4, %s2
  $region1: #{tpu_custom_call.1} parent=0
    #allocation3 [shape = 'u8[8192]{0}', space=vmem, size = 0x2000, scoped, tag = 'input window, operand 0']
    #allocation4 [shape = 's32[2]{0}', space=sflag, size = 0x8, scoped, tag = 'scoped memory for tpu_custom_call.1']
    #allocation5 [shape = 's32[2]{0}', space=sflag, size = 0x8, scoped, tag = 'scoped memory for tpu_custom_call.1']
    #allocation6 [shape = 'u8[8192]{0}', space=vmem, size = 0x2000, scoped, tag = 'output window, operand 0']
    %6 = vsyncpa [#allocation4], 0
    %s7 = scalar_lea.sflag [#allocation4], 1
    %8 = vsyncpa %s7, 0
    %9 = vsyncpa [#allocation5], 0
    %s10 = scalar_lea.sflag [#allocation5], 1
    %11 = vsyncpa %s10, 0
    loop: start=0, step=1, limit=4
    $region2: #{tpu_custom_call.1} parent=1 // loop_pre_header
      _
    $region3: #{tpu_custom_call.1} parent=1 // loop_header
      %s13 = sphi 0, %s17
      %p14 = scmp.ge.s32.totalorder %s13, 4
      %s20 = sphi 0, %s32
      %s21 = sphi 0, %s28
      %s22 = sphi 0, %s20
      %s23 = sphi 0, %s21
      %s24 = sphi 0, %s22
      %s25 = sphi 0, %s23
      %s37 = sphi 0, %s39
      %s40 = sphi 0, %s37
      %s41 = sphi 0, %s40
      %s57 = sphi 0, %s41
      %s63 = sphi 0, %s65
      %s66 = sphi 0, %s63
      %s67 = sphi 0, %s66
      %s83 = sphi 0, %s67
    $region4: #{tpu_custom_call.1} parent=1 // loop_header_branch
      %16 = sbr.rel (%p14) target = $region8
    $region5: #{tpu_custom_call.1} parent=1 // loop_body
      %s18 = ssub.s32 %s13, 1
      %s19 = ssub.s32 %s13, 2
      %s26 = sadd.s32 1, %s21
      %p27 = scmp.ge.s32.totalorder %s26, 1
      %s28 = scalar_select %p27, 0, %s26
      %s29 = sadd.s32 1, %s20
      %s30 = scalar_select %p27, %s29, %s20
      %p31 = scmp.ge.s32.totalorder %s30, 2
      %s32 = scalar_select %p31, 0, %s30
      %s33 = ssub.s32 %s20, %s32
      %s34 = ssub.s32 %s21, %s28
      %s35 = sor.u32 %s33, %s34
      %p36 = scmp.eq.s32.totalorder %s35, 0
      %s38 = sadd.s32 %s37, 1
      %s39 = scalar_select %p36, %s37, %s38
      %p42 = pneg %p36
      %p43 = scmp.eq.s32.totalorder %s13, 1
      %p44 = por %p42, %p43
      %p45 = scmp.ne.s32.totalorder %s37, %s40
      %p46 = scmp.eq.s32.totalorder %s13, 0
      %p47 = por %p45, %p46
      %p48 = scmp.ne.s32.totalorder %s37, %s40
      %p49 = scmp.eq.s32.totalorder %s18, 1
      %p50 = por %p48, %p49
      %p51 = scmp.ne.s32.totalorder %s40, %s41
      %p52 = scmp.eq.s32.totalorder %s18, 0
      %p53 = por %p51, %p52
      %p54 = scmp.ne.s32.totalorder %s40, %s41
      %p55 = scmp.eq.s32.totalorder %s19, 1
      %p56 = por %p54, %p55
      %p58 = scmp.ne.s32.totalorder %s41, %s57
      %p59 = scmp.eq.s32.totalorder %s19, 0
      %p60 = por %p58, %p59
      %s61 = ssub.s32 %s20, %s32
      %p62 = scmp.eq.s32.totalorder %s61, 0
      %s64 = sadd.s32 %s63, 1
      %s65 = scalar_select %p62, %s63, %s64
      %p68 = pneg %p62
      %p69 = scmp.eq.s32.totalorder %s13, 1
      %p70 = por %p68, %p69
      %p71 = scmp.ne.s32.totalorder %s63, %s66
      %p72 = scmp.eq.s32.totalorder %s13, 0
      %p73 = por %p71, %p72
      %p74 = scmp.ne.s32.totalorder %s63, %s66
      %p75 = scmp.eq.s32.totalorder %s18, 1
      %p76 = por %p74, %p75
      %p77 = scmp.ne.s32.totalorder %s66, %s67
      %p78 = scmp.eq.s32.totalorder %s18, 0
      %p79 = por %p77, %p78
      %p80 = scmp.ne.s32.totalorder %s66, %s67
      %p81 = scmp.eq.s32.totalorder %s19, 1
      %p82 = por %p80, %p81
      %p84 = scmp.ne.s32.totalorder %s67, %s83
      %p85 = scmp.eq.s32.totalorder %s19, 0
      %p86 = por %p84, %p85
      %p87 = scmp.le.s32.totalorder 1, %s13
      %p88 = scmp.lt.s32.totalorder %s13, 3
      %p89 = pnand %p87, %p88
      %p90 = pneg %p89
      // Predicated region
      $region9: #{tpu_custom_call.1} parent=5 // pred_check
        _
      $region10: #{tpu_custom_call.1} parent=5 // pred_check_branch
        %92 = sbr.rel (%p89) target = $region12
      $region11: #{tpu_custom_call.1} parent=5 // pred_region
        %s93 = ssub.s32 %s13, 1
      $region12: #{tpu_custom_call.1} parent=5 // pred_fallthru
        _
      %p94 = scmp.lt.s32.totalorder %s13, 2
      // Predicated region
      $region13: #{tpu_custom_call.1} parent=5 // pred_check
        %p95 = pneg %p94
      $region14: #{tpu_custom_call.1} parent=5 // pred_check_branch
        %97 = sbr.rel (%p95) target = $region16
      $region15: #{tpu_custom_call.1} parent=5 // pred_region
        // Predicated region
        $region17: #{tpu_custom_call.1} parent=15 // pred_check
          %p98 = pneg %p47
        $region18: #{tpu_custom_call.1} parent=15 // pred_check_branch
          %100 = sbr.rel (%p98) target = $region20
        $region19: #{tpu_custom_call.1} parent=15 // pred_region
          %s101 = sand.u32 %s37, 1
          %s102 = scalar_lea.sflag [#allocation4], %s101
          %s103 = sand.u32 %s37, 1
          %s104 = smul.addr %s103, 8
          %s105 = scalar_lea.vmem [#allocation3], %s104
          %s106 = smul.u32 2, %s21
          %s108 = ssub.s32 128, 128
          %109 = vsyncadd %s102, %s108
          %s110 = smul.addr %s20, 2
          %s111 = sadd.s32 %s106, %s110
          %s112 = smul.addr %s111, 64
          %s113 = scalar_lea.hbm %s0, %s112
          %s115 = sshll.u32 %s105, 4
          %s116 = int_to_ptr.vmem [resolvable:$true] %s115
          %118 = dma.hbm_to_vmem [thread:$0]  %s113, 128, %s116, %s102
        $region20: #{tpu_custom_call.1} parent=15 // pred_fallthru
          _
      $region16: #{tpu_custom_call.1} parent=5 // pred_fallthru
        _
      %p119 = scmp.le.s32.totalorder 1, %s13
      %p120 = scmp.lt.s32.totalorder %s13, 3
      %p121 = pnand %p119, %p120
      %p122 = pneg %p121
      // Predicated region
      $region21: #{tpu_custom_call.1} parent=5 // pred_check
        _
      $region22: #{tpu_custom_call.1} parent=5 // pred_check_branch
        %124 = sbr.rel (%p121) target = $region24
      $region23: #{tpu_custom_call.1} parent=5 // pred_region
        %s125 = ssub.s32 %s13, 1
        %s126 = sand.u32 %s40, 1
        %s127 = scalar_lea.sflag [#allocation4], %s126
        %s128 = sand.u32 %s40, 1
        %s129 = smul.addr %s128, 8
        %s130 = scalar_lea.vmem [#allocation3], %s129
        // Predicated region
        $region25: #{tpu_custom_call.1} parent=23 // pred_check
          %p131 = pneg %p53
        $region26: #{tpu_custom_call.1} parent=23 // pred_check_branch
          %133 = sbr.rel (%p131) target = $region28
        $region27: #{tpu_custom_call.1} parent=23 // pred_region
          %134 = dma.done %s127, 128
        $region28: #{tpu_custom_call.1} parent=23 // pred_fallthru
          _
        %s135 = sand.u32 %s40, 1
        %s136 = scalar_lea.sflag [#allocation4], %s135
        %s137 = sand.u32 %s40, 1
        %s138 = smul.addr %s137, 8
        %s139 = scalar_lea.vmem [#allocation3], %s138
        %p140 = pneg %p53
        %p141 = pneg %p50
        %p142 = pneg %p79
        %p143 = pneg %p76
        %s144 = sand.u32 %s66, 1
        %s145 = scalar_lea.sflag [#allocation5], %s144
        %s146 = sand.u32 %s66, 1
        %s147 = smul.addr %s146, 8
        %s148 = scalar_lea.vmem [#allocation6], %s147
        %s149 = smul.u32 2, %s23
        %p150 = scmp.eq.s32.totalorder %s23, 0
        // Predicated region
        $region29: #{tpu_custom_call.1} parent=23 // pred_check
          %p151 = pneg %p150
        $region30: #{tpu_custom_call.1} parent=23 // pred_check_branch
          %153 = sbr.rel (%p151) target = $region32
        $region31: #{tpu_custom_call.1} parent=23 // pred_region
          %v154 = vlaneseq
          %vm155 = vcmp.ge.s32.totalorder %v154, 0
          %vm156 = vcmp.lt.s32.totalorder %v154, 256
          %vm157 = vmand %vm155, %vm156
          %158 = vst.msk [vmem:[#allocation2] sm:$0x3] %vm157, 0.0
        $region32: #{tpu_custom_call.1} parent=23 // pred_fallthru
          _
        %v159 = vld [vmem:[%s130] sm:$0xff]
        %v161 = vcombine.high %v159, %v159
        %vm163 = vcmask 1043456
        %v164 = vsel %vm163, %v159, -inf
        %v165 = vrot.slane %v164, 4
        %v166 = vmax.f32 %v164, %v165
        %v167 = vrot.slane %v166, 2
        %v168 = vmax.f32 %v166, %v167
        %v169 = vrot.slane %v168, 1
        %v170 = vmax.f32 %v168, %v169
        %v171 = vsel %vm163, %v161, -inf
        %v172 = vrot.slane %v171, 4
        %v173 = vmax.f32 %v171, %v172
        %v174 = vrot.slane %v173, 2
        %v175 = vmax.f32 %v173, %v174
        %v176 = vrot.slane %v175, 1
        %v177 = vmax.f32 %v175, %v176
        %v180 = vcombine.low %v170, %v177
        %v182 = vsub.f32 %v159, %v180
        %v183 = vmul.f32 %v182, 1.442695
        %v184 = vpow.pop %v183
        %v186 = vcombine.high %v184, %v184
        %v188 = vsel %vm163, %v184, 0.0
        %v189 = vrot.slane %v188, 4
        %v190 = vadd.f32 %v188, %v189
        %v191 = vrot.slane %v190, 2
        %v192 = vadd.f32 %v190, %v191
        %v193 = vrot.slane %v192, 1
        %v194 = vadd.f32 %v192, %v193
        %v195 = vsel %vm163, %v186, 0.0
        %v196 = vrot.slane %v195, 4
        %v197 = vadd.f32 %v195, %v196
        %v198 = vrot.slane %v197, 2
        %v199 = vadd.f32 %v197, %v198
        %v200 = vrot.slane %v199, 1
        %v201 = vadd.f32 %v199, %v200
        %v202 = vmul.f32 %v184, %v182
        %v204 = vcombine.high %v202, %v202
        %v206 = vsel %vm163, %v202, 0.0
        %v207 = vrot.slane %v206, 4
        %v208 = vadd.f32 %v206, %v207
        %v209 = vrot.slane %v208, 2
        %v210 = vadd.f32 %v208, %v209
        %v211 = vrot.slane %v210, 1
        %v212 = vadd.f32 %v210, %v211
        %v213 = vsel %vm163, %v204, 0.0
        %v214 = vrot.slane %v213, 4
        %v215 = vadd.f32 %v213, %v214
        %v216 = vrot.slane %v215, 2
        %v217 = vadd.f32 %v215, %v216
        %v218 = vrot.slane %v217, 1
        %v219 = vadd.f32 %v217, %v218
        %v220 = vrcp.pop %v194
        %v221 = vmul.f32 %v212, %v220
        %v222 = vrcp.pop %v201
        %v223 = vmul.f32 %v219, %v222
        %v224 = vlog2.pop %v194
        %v225 = vmul.f32 %v224, 0.6931472
        %v226 = vlog2.pop %v201
        %v227 = vmul.f32 %v226, 0.6931472
        %v228 = vsub.f32 %v221, %v225
        %v229 = vsub.f32 %v223, %v227
        %v230 = vld [vmem:[#allocation2] sm:$0x3]
        %v233 = vcombine.low %v228, %v229
        %v235 = vunpack.c.l.s4 1966171168
        %v236 = vunpack.c.0.s8 %v235
        %v237 = vlaneseq
        %v238 = vshrl.u32 %v237, 7
        %v239 = vsub.s32 %v236, %v238
        %v240 = vrot.slane %v233, %v239
        %v242 = vunpack.c.l.s4 1966171168
        %v243 = vunpack.c.0.s8 %v242
        %v244 = vlaneseq
        %v245 = vshrl.u32 %v244, 7
        %v246 = vsub.s32 %v243, %v245
        %v247 = vrot.slane %v240, %v246
        %v249 = vadd.f32 %v230, %v247
        %v250 = vlaneseq
        %vm251 = vcmp.ge.s32.totalorder %v250, 0
        %vm252 = vcmp.lt.s32.totalorder %v250, 256
        %vm253 = vmand %vm251, %vm252
        %254 = vst.msk [vmem:[#allocation2] sm:$0x3] %vm253, %v249
        // Predicated region
        $region33: #{tpu_custom_call.1} parent=23 // pred_check
          %p255 = pneg %p150
        $region34: #{tpu_custom_call.1} parent=23 // pred_check_branch
          %257 = sbr.rel (%p255) target = $region36
        $region35: #{tpu_custom_call.1} parent=23 // pred_region
          %v258 = vld [vmem:[#allocation2] sm:$0x3]
          %v260 = vlaneseq
          %v261 = vshrl.u32 %v260, 7
          %v262 = vsub.s32 0, %v261
          %v263 = vrot.slane %v258, %v262
          %v264 = vlaneseq
          %v265 = vshrl.u32 %v264, 7
          %v266 = vsub.s32 1, %v265
          %v267 = vrot.slane %v258, %v266
          %vm270 = vcmask 1040384
          %v271 = vsel %vm270, %v263, 0.0
          %v272 = vsel %vm270, %v267, 0.0
          %v273 = vadd.f32 %v271, %v272
          %274 = vadd.xlane.f32.xlu0 %v273
          %v275 = vpop.xlane.xlu0 %274
          %v276 = vrot.slane %v275, 4
          %v277 = vadd.f32 %v275, %v276
          %v278 = vrot.slane %v277, 2
          %v279 = vadd.f32 %v277, %v278
          %v280 = vrot.slane %v279, 1
          %v281 = vadd.f32 %v279, %v280
          %s282 = vtos %v281
          %v283 = vstv %s282
          %284 = vst [vmem:[%s148] sm:$0xff] %v283
        $region36: #{tpu_custom_call.1} parent=23 // pred_fallthru
          _
        %s285 = sand.u32 %s66, 1
        %s286 = scalar_lea.sflag [#allocation5], %s285
        %s287 = sand.u32 %s66, 1
        %s288 = smul.addr %s287, 8
        %s289 = scalar_lea.vmem [#allocation6], %s288
        // Predicated region
        $region37: #{tpu_custom_call.1} parent=23 // pred_check
          %p290 = pneg %p76
        $region38: #{tpu_custom_call.1} parent=23 // pred_check_branch
          %292 = sbr.rel (%p290) target = $region40
        $region39: #{tpu_custom_call.1} parent=23 // pred_region
          %s294 = ssub.s32 128, 128
          %295 = vsyncadd %s286, %s294
          %s296 = smul.addr %s22, 128
          %s297 = scalar_lea.hbm %s1, %s296
          %s299 = sshll.u32 %s289, 4
          %s300 = int_to_ptr.vmem [resolvable:$true] %s299
          %302 = dma.vmem_to_hbm [thread:$0]  %s300, 128, %s297, %s286
        $region40: #{tpu_custom_call.1} parent=23 // pred_fallthru
          _
      $region24: #{tpu_custom_call.1} parent=5 // pred_fallthru
        _
      %p303 = scmp.le.s32.totalorder 2, %s13
      // Predicated region
      $region41: #{tpu_custom_call.1} parent=5 // pred_check
        %p304 = pneg %p303
      $region42: #{tpu_custom_call.1} parent=5 // pred_check_branch
        %306 = sbr.rel (%p304) target = $region44
      $region43: #{tpu_custom_call.1} parent=5 // pred_region
        %s307 = ssub.s32 %s13, 2
        // Predicated region
        $region45: #{tpu_custom_call.1} parent=43 // pred_check
          %p308 = pneg %p82
        $region46: #{tpu_custom_call.1} parent=43 // pred_check_branch
          %310 = sbr.rel (%p308) target = $region48
        $region47: #{tpu_custom_call.1} parent=43 // pred_region
          %s311 = sand.u32 %s67, 1
          %s312 = scalar_lea.sflag [#allocation5], %s311
          %s313 = sand.u32 %s67, 1
          %s314 = smul.addr %s313, 8
          %s315 = scalar_lea.vmem [#allocation6], %s314
          %316 = dma.done %s312, 128
        $region48: #{tpu_custom_call.1} parent=43 // pred_fallthru
          _
      $region44: #{tpu_custom_call.1} parent=5 // pred_fallthru
        _
    $region6: #{tpu_custom_call.1} parent=1 // loop_footer
      %s17 = sadd.s32 1, %s13
    $region7: #{tpu_custom_call.1} parent=1 // loop_footer_branch
      %12 = sbr.rel target = $region3
    $region8: #{tpu_custom_call.1} parent=1 // loop_exit
      _
    %317 = vsyncpa [#allocation4], 1
    %s318 = scalar_lea.sflag [#allocation4], 1
    %319 = vsyncpa %s318, 1
    %320 = vsyncpa [#allocation5], 1
    %s321 = scalar_lea.sflag [#allocation5], 1
    %322 = vsyncpa %s321, 1

</llo_original>
